<compile_context>
chip_gen: v5e
topology: v5e:2x2
jax: 0.10.0
libtpu: 0.0.40
codegen_flags: <defaults>
</compile_context>

<pallas_src>
import jax
import jax.numpy as jnp
from jax.experimental import pallas as pl
from jax.experimental.pallas import tpu as pltpu


def classification_kernel(cf_ref, cfhm_ref, halo_ref,
                          wfuse_ref, bfuse_ref, wpred_ref, bpred_ref,
                          whm_ref, bhm1_ref, whmp_ref, bhmp_ref,
                          out_x_ref, out_hm_ref):
    # cf_ref / cfhm_ref : (1, 4E, Tb)  -- time on lanes
    # halo_ref          : (1, 1, 4E, 2) -- [:,0] column left of tile, [:,1] column right of tile
    # weights are (Cout, Cin) matmul form; biases are (Cout, 1) float32.
    x = cf_ref[0]          # (4E, Tb)
    xhm = cfhm_ref[0]      # (4E, Tb)
    halo = halo_ref[0, 0]  # (4E, 2)
    cdt = x.dtype
    Tb = x.shape[1]

    # ---- linear branch: 1x1 conv -> dropout (identity in eval) -> 1x1 conv ----
    h = jnp.dot(wfuse_ref[...], x, preferred_element_type=jnp.float32) + bfuse_ref[...]
    # TODO(synk): nn.Dropout() is identity in eval mode; training-mode random mask not implemented.
    y = jnp.dot(wpred_ref[...], h.astype(cdt),
                preferred_element_type=jnp.float32) + bpred_ref[...]
    out_x_ref[0] = y.astype(out_x_ref.dtype)

    # ---- hm branch: k=3 conv (zero padding via halo columns) -> ReLU -> 1x1 conv ----
    left = halo[:, 0:1]                                        # x[t-1] for the first tile column
    right = halo[:, 1:2]                                       # x[t+1] for the last tile column
    x_prev = jnp.concatenate([left, xhm[:, :Tb - 1]], axis=1)  # shifted right by one step
    x_next = jnp.concatenate([xhm[:, 1:], right], axis=1)      # shifted left by one step
    xcat = jnp.concatenate([x_prev, xhm, x_next], axis=0)      # (12E, Tb)
    hhm = jnp.dot(whm_ref[...], xcat,
                  preferred_element_type=jnp.float32) + bhm1_ref[...]
    hhm = jnp.maximum(hhm, 0.0)                                # ReLU in f32
    yhm = jnp.dot(whmp_ref[...], hhm.astype(cdt),
                  preferred_element_type=jnp.float32) + bhmp_ref[...]
    out_hm_ref[0] = yhm.astype(out_hm_ref.dtype)


def classification_module_forward(concat_feature, concat_feature_hm, params,
                                  *, compute_dtype=jnp.float32, t_block_max=512):
    """concat_feature, concat_feature_hm: (B, 4*E, T) float32 (PyTorch NCW)."""
    B, C4, T = concat_feature.shape
    E = params["w_fuse"].shape[0]      # w_fuse: (E, 4E, 1)
    C = params["w_pred"].shape[0]      # w_pred: (C, E, 1)
    assert C4 == 4 * E

    # Pad time to a multiple of 128 (lane-dense stores + aligned tiles); the
    # zero columns match the k=3 conv's zero padding and are sliced off later.
    Tp = max(128, ((T + 127) // 128) * 128)
    cf = concat_feature.astype(compute_dtype)
    cfhm = concat_feature_hm.astype(compute_dtype)
    if Tp != T:
        cf = jnp.pad(cf, ((0, 0), (0, 0), (0, Tp - T)))
        cfhm = jnp.pad(cfhm, ((0, 0), (0, 0), (0, Tp - T)))

    # Largest 128-multiple tile (<= t_block_max) dividing padded T (keeps VMEM
    # small enough for v7x's 64 MiB while staying lane-dense).
    TB = 128
    for cand in (512, 384, 256, 128):
        if cand <= t_block_max and Tp % cand == 0:
            TB = cand
            break
    nT = Tp // TB

    # One-column halos for the k=3 conv at tile boundaries (tiny side array).
    last_cols = cfhm[:, :, TB - 1::TB]                   # (B, 4E, nT): last col of each tile
    first_cols = cfhm[:, :, 0::TB]                       # (B, 4E, nT): first col of each tile
    left = jnp.pad(last_cols[:, :, :-1], ((0, 0), (0, 0), (1, 0)))   # zeros for global left edge
    right = jnp.pad(first_cols[:, :, 1:], ((0, 0), (0, 0), (0, 1)))  # zeros for global right edge
    halo = jnp.transpose(jnp.stack([left, right], axis=-1), (0, 2, 1, 3))  # (B, nT, 4E, 2)

    # Conv weights in (Cout, Cin) matmul form; k=3 taps stacked into (E, 12E).
    wdt = compute_dtype
    wfuse = params["w_fuse"][:, :, 0].astype(wdt)                    # (E, 4E)
    bfuse = params["b_fuse"].astype(jnp.float32).reshape(E, 1)
    wpred = params["w_pred"][:, :, 0].astype(wdt)                    # (C, E)
    bpred = params["b_pred"].astype(jnp.float32).reshape(C, 1)
    whm = jnp.concatenate([params["w_hm1"][:, :, k] for k in range(3)],
                          axis=1).astype(wdt)                        # (E, 12E)
    bhm1 = params["b_hm1"].astype(jnp.float32).reshape(E, 1)
    whmp = params["w_hm2"][:, :, 0].astype(wdt)                      # (C, E)
    bhmp = params["b_hm2"].astype(jnp.float32).reshape(C, 1)

    itemsize = jnp.dtype(compute_dtype).itemsize
    cost = pl.CostEstimate(
        flops=2 * B * Tp * (16 * E * E + 2 * E * C),
        transcendentals=0,
        bytes_accessed=int(2 * B * C4 * Tp * itemsize + 2 * B * C * Tp * 4
                           + (wfuse.size + wpred.size + whm.size + whmp.size) * itemsize),
    )

    def tiled(rows):      # (B, rows, Tp) arrays tiled over (b, t)
        return pl.BlockSpec((1, rows, TB), lambda b, t: (b, 0, t))

    def whole(shape):     # small weights / biases: single resident block
        return pl.BlockSpec(shape, lambda b, t: (0,) * len(shape))

    out_x, out_hm = pl.pallas_call(
        classification_kernel,
        out_shape=(jax.ShapeDtypeStruct((B, C, Tp), jnp.float32),
                   jax.ShapeDtypeStruct((B, C, Tp), jnp.float32)),
        grid=(B, nT),
        in_specs=[
            tiled(C4),                                               # concat_feature
            tiled(C4),                                               # concat_feature_hm
            pl.BlockSpec((1, 1, C4, 2), lambda b, t: (b, t, 0, 0)),  # halo columns
            whole((E, C4)), whole((E, 1)),                           # linear_fuse
            whole((C, E)), whole((C, 1)),                            # linear_pred
            whole((E, 3 * C4)), whole((E, 1)),                       # hm conv k=3 (stacked taps)
            whole((C, E)), whole((C, 1)),                            # hm conv k=1
        ],
        out_specs=(tiled(C), tiled(C)),
        compiler_params=pltpu.CompilerParams(
            dimension_semantics=("parallel", "parallel")),
        cost_estimate=cost,
    )(cf, cfhm, halo, wfuse, bfuse, wpred, bpred, whm, bhm1, whmp, bhmp)

    x = jnp.transpose(out_x[:, :, :T], (0, 2, 1))   # (B, T, C)  (small, cheap flip)
    x_hm = out_hm[:, :, :T]                         # (B, C, T)  no transpose needed
    return x, x_hm


def _reference_forward(concat_feature, concat_feature_hm, params):
    """Pure-JAX reference mirroring the PyTorch module (eval mode), high precision."""
    hp = jax.lax.Precision.HIGHEST
    cf = jnp.transpose(concat_feature, (0, 2, 1))        # (B, T, 4E)
    cfhm = jnp.transpose(concat_feature_hm, (0, 2, 1))

    h = jnp.einsum("btc,oc->bto", cf, params["w_fuse"][:, :, 0], precision=hp) + params["b_fuse"]
    x = jnp.einsum("bte,oe->bto", h, params["w_pred"][:, :, 0], precision=hp) + params["b_pred"]

    T = cfhm.shape[1]
    pad = jnp.pad(cfhm, ((0, 0), (1, 1), (0, 0)))
    hhm = (jnp.einsum("btc,oc->bto", pad[:, 0:T], params["w_hm1"][:, :, 0], precision=hp)
           + jnp.einsum("btc,oc->bto", pad[:, 1:T + 1], params["w_hm1"][:, :, 1], precision=hp)
           + jnp.einsum("btc,oc->bto", pad[:, 2:T + 2], params["w_hm1"][:, :, 2], precision=hp)
           + params["b_hm1"])
    hhm = jnp.maximum(hhm, 0.0)
    x_hm = jnp.einsum("bte,oe->bto", hhm, params["w_hm2"][:, :, 0], precision=hp) + params["b_hm2"]
    return x, jnp.transpose(x_hm, (0, 2, 1))


def init_params(key, num_classes, embedding_dim):
    E, C = embedding_dim, num_classes
    ks = jax.random.split(key, 8)
    s = 0.05
    return {
        "w_fuse": s * jax.random.normal(ks[0], (E, 4 * E, 1), jnp.float32),
        "b_fuse": s * jax.random.normal(ks[1], (E,), jnp.float32),
        "w_pred": s * jax.random.normal(ks[2], (C, E, 1), jnp.float32),
        "b_pred": s * jax.random.normal(ks[3], (C,), jnp.float32),
        "w_hm1": s * jax.random.normal(ks[4], (E, 4 * E, 3), jnp.float32),
        "b_hm1": s * jax.random.normal(ks[5], (E,), jnp.float32),
        "w_hm2": s * jax.random.normal(ks[6], (C, E, 1), jnp.float32),
        "b_hm2": s * jax.random.normal(ks[7], (C,), jnp.float32),
    }


if __name__ == "__main__":
    B, E, T, C = 2, 8, 16, 6          # embedding_dim=8 -> in_channels=32, num_classes=6
    key = jax.random.PRNGKey(0)
    k_feat, k_hm, k_par = jax.random.split(key, 3)

    concat_feature = jax.random.normal(k_feat, (B, 4 * E, T), jnp.float32)
    concat_feature_hm = jax.random.normal(k_hm, (B, 4 * E, T), jnp.float32)
    params = init_params(k_par, num_classes=C, embedding_dim=E)

    # --- f32 path, small T (single lane tile) ---
    x, x_hm = classification_module_forward(concat_feature, concat_feature_hm, params)
    jax.block_until_ready((x, x_hm))
    x_ref, x_hm_ref = _reference_forward(concat_feature, concat_feature_hm, params)
    assert x.shape == (B, T, C) and x_hm.shape == (B, C, T)
    assert jnp.allclose(x, x_ref, atol=5e-3, rtol=5e-3)
    assert jnp.allclose(x_hm, x_hm_ref, atol=5e-3, rtol=5e-3)

    # --- f32 path, multi-tile T (exercises 128-wide tiling + halo columns) ---
    T2 = 320
    cf2 = jax.random.normal(jax.random.PRNGKey(1), (B, 4 * E, T2), jnp.float32)
    cfhm2 = jax.random.normal(jax.random.PRNGKey(2), (B, 4 * E, T2), jnp.float32)
    x2, x_hm2 = classification_module_forward(cf2, cfhm2, params)
    jax.block_until_ready((x2, x_hm2))
    x2_ref, x_hm2_ref = _reference_forward(cf2, cfhm2, params)
    assert jnp.allclose(x2, x2_ref, atol=5e-3, rtol=5e-3)
    assert jnp.allclose(x_hm2, x_hm2_ref, atol=5e-3, rtol=5e-3)

    # --- bf16 operand path (v6e/v7x), f32 accumulation + epilogue ---
    xb, x_hmb = classification_module_forward(concat_feature, concat_feature_hm, params,
                                              compute_dtype=jnp.bfloat16)
    jax.block_until_ready((xb, x_hmb))
    assert jnp.allclose(xb, x_ref, atol=5e-2, rtol=5e-2)
    assert jnp.allclose(x_hmb, x_hm_ref, atol=5e-2, rtol=5e-2)

    print("KERNEL_OK")
</pallas_src>

<mosaic_0001>
module attributes {stable_mosaic.version = 11 : i64} {
  func.func @classification_kernel(%arg0: i32, %arg1: i32, %arg2: memref<1x32x128xf32, #tpu.memory_space<vmem>>, %arg3: memref<1x32x128xf32, #tpu.memory_space<vmem>>, %arg4: memref<1x1x32x2xf32, #tpu.memory_space<vmem>>, %arg5: memref<8x32xf32, #tpu.memory_space<vmem>>, %arg6: memref<8x1xf32, #tpu.memory_space<vmem>>, %arg7: memref<6x8xf32, #tpu.memory_space<vmem>>, %arg8: memref<6x1xf32, #tpu.memory_space<vmem>>, %arg9: memref<8x96xf32, #tpu.memory_space<vmem>>, %arg10: memref<8x1xf32, #tpu.memory_space<vmem>>, %arg11: memref<6x8xf32, #tpu.memory_space<vmem>>, %arg12: memref<6x1xf32, #tpu.memory_space<vmem>>, %arg13: memref<1x6x128xf32, #tpu.memory_space<vmem>>, %arg14: memref<1x6x128xf32, #tpu.memory_space<vmem>>) attributes {dimension_semantics = [#tpu.dimension_semantics<parallel>, #tpu.dimension_semantics<parallel>], iteration_bounds = array<i64: 2, 1>, scalar_prefetch = 0 : i64, scratch_operands = 0 : i64, tpu.core_type = #tpu.core_type<tc>, window_params = [{transform_indices = @transform_0, window_bounds = array<i64: 1, 32, 128>}, {transform_indices = @transform_1, window_bounds = array<i64: 1, 32, 128>}, {transform_indices = @transform_2, window_bounds = array<i64: 1, 1, 32, 2>}, {pipeline_mode = #tpu.pipeline_mode<synchronous>, transform_indices = @transform_3, window_bounds = array<i64: 8, 32>}, {pipeline_mode = #tpu.pipeline_mode<synchronous>, transform_indices = @transform_4, window_bounds = array<i64: 8, 1>}, {pipeline_mode = #tpu.pipeline_mode<synchronous>, transform_indices = @transform_5, window_bounds = array<i64: 6, 8>}, {pipeline_mode = #tpu.pipeline_mode<synchronous>, transform_indices = @transform_6, window_bounds = array<i64: 6, 1>}, {pipeline_mode = #tpu.pipeline_mode<synchronous>, transform_indices = @transform_7, window_bounds = array<i64: 8, 96>}, {pipeline_mode = #tpu.pipeline_mode<synchronous>, transform_indices = @transform_8, window_bounds = array<i64: 8, 1>}, {pipeline_mode = #tpu.pipeline_mode<synchronous>, transform_indices = @transform_9, window_bounds = array<i64: 6, 8>}, {pipeline_mode = #tpu.pipeline_mode<synchronous>, transform_indices = @transform_10, window_bounds = array<i64: 6, 1>}, {transform_indices = @transform_11, window_bounds = array<i64: 1, 6, 128>}, {transform_indices = @transform_12, window_bounds = array<i64: 1, 6, 128>}]} {
    %c0 = arith.constant 0 : index
    %c0_0 = arith.constant 0 : index
    %c0_1 = arith.constant 0 : index
    %0 = vector.load %arg2[%c0, %c0_0, %c0_1] : memref<1x32x128xf32, #tpu.memory_space<vmem>>, vector<1x32x128xf32>
    %1 = vector.shape_cast %0 : vector<1x32x128xf32> to vector<32x128xf32>
    %c0_2 = arith.constant 0 : index
    %c0_3 = arith.constant 0 : index
    %c0_4 = arith.constant 0 : index
    %2 = vector.load %arg3[%c0_2, %c0_3, %c0_4] : memref<1x32x128xf32, #tpu.memory_space<vmem>>, vector<1x32x128xf32>
    %3 = vector.shape_cast %2 : vector<1x32x128xf32> to vector<32x128xf32>
    %c0_5 = arith.constant 0 : index
    %c0_6 = arith.constant 0 : index
    %c0_7 = arith.constant 0 : index
    %c0_8 = arith.constant 0 : index
    %4 = vector.load %arg4[%c0_5, %c0_6, %c0_7, %c0_8] : memref<1x1x32x2xf32, #tpu.memory_space<vmem>>, vector<1x1x32x2xf32>
    %5 = vector.shape_cast %4 : vector<1x1x32x2xf32> to vector<32x2xf32>
    %c0_9 = arith.constant 0 : index
    %c0_10 = arith.constant 0 : index
    %6 = vector.load %arg5[%c0_9, %c0_10] : memref<8x32xf32, #tpu.memory_space<vmem>>, vector<8x32xf32>
    %cst = arith.constant dense<0.000000e+00> : vector<8x128xf32>
    %7 = tpu.matmul %6, %1, %cst {dimension_numbers = #tpu.dot_dimension_numbers<[1], [0], [0], [1], [0, 0, 1, 1], [], []>} : vector<8x32xf32>, vector<32x128xf32>, vector<8x128xf32> -> vector<8x128xf32>
    %c0_11 = arith.constant 0 : index
    %c0_12 = arith.constant 0 : index
    %8 = vector.load %arg6[%c0_11, %c0_12] : memref<8x1xf32, #tpu.memory_space<vmem>>, vector<8x1xf32>
    %9 = vector.broadcast %8 : vector<8x1xf32> to vector<8x128xf32>
    %10 = arith.addf %7, %9 : vector<8x128xf32>
    %c0_13 = arith.constant 0 : index
    %c0_14 = arith.constant 0 : index
    %11 = vector.load %arg7[%c0_13, %c0_14] : memref<6x8xf32, #tpu.memory_space<vmem>>, vector<6x8xf32>
    %cst_15 = arith.constant dense<0.000000e+00> : vector<6x128xf32>
    %12 = tpu.matmul %11, %10, %cst_15 {dimension_numbers = #tpu.dot_dimension_numbers<[1], [0], [0], [1], [0, 0, 1, 1], [], []>} : vector<6x8xf32>, vector<8x128xf32>, vector<6x128xf32> -> vector<6x128xf32>
    %c0_16 = arith.constant 0 : index
    %c0_17 = arith.constant 0 : index
    %13 = vector.load %arg8[%c0_16, %c0_17] : memref<6x1xf32, #tpu.memory_space<vmem>>, vector<6x1xf32>
    %14 = vector.broadcast %13 : vector<6x1xf32> to vector<6x128xf32>
    %15 = arith.addf %12, %14 : vector<6x128xf32>
    %c0_18 = arith.constant 0 : index
    %c0_19 = arith.constant 0 : index
    %c0_20 = arith.constant 0 : index
    %16 = vector.load %arg13[%c0_18, %c0_19, %c0_20] : memref<1x6x128xf32, #tpu.memory_space<vmem>>, vector<1x6x128xf32>
    %17 = vector.shape_cast %16 : vector<1x6x128xf32> to vector<6x128xf32>
    %18 = vector.shape_cast %15 : vector<6x128xf32> to vector<1x6x128xf32>
    tpu.vector_store %arg13[%c0_18, %c0_19, %c0_20], %18 {strides = array<i32>} : memref<1x6x128xf32, #tpu.memory_space<vmem>>, vector<1x6x128xf32>,
    %19 = vector.extract_strided_slice %5 {offsets = [0, 0], sizes = [32, 1], strides = [1, 1]} : vector<32x2xf32> to vector<32x1xf32>
    %20 = vector.extract_strided_slice %5 {offsets = [0, 1], sizes = [32, 1], strides = [1, 1]} : vector<32x2xf32> to vector<32x1xf32>
    %21 = vector.extract_strided_slice %3 {offsets = [0, 0], sizes = [32, 127], strides = [1, 1]} : vector<32x128xf32> to vector<32x127xf32>
    %22 = tpu.concatenate %19, %21 in 1 : vector<32x1xf32>, vector<32x127xf32> -> vector<32x128xf32>
    %23 = vector.extract_strided_slice %3 {offsets = [0, 1], sizes = [32, 127], strides = [1, 1]} : vector<32x128xf32> to vector<32x127xf32>
    %24 = tpu.concatenate %23, %20 in 1 : vector<32x127xf32>, vector<32x1xf32> -> vector<32x128xf32>
    %25 = tpu.concatenate %22, %3, %24 in 0 : vector<32x128xf32>, vector<32x128xf32>, vector<32x128xf32> -> vector<96x128xf32>
    %c0_21 = arith.constant 0 : index
    %c0_22 = arith.constant 0 : index
    %26 = vector.load %arg9[%c0_21, %c0_22] : memref<8x96xf32, #tpu.memory_space<vmem>>, vector<8x96xf32>
    %cst_23 = arith.constant dense<0.000000e+00> : vector<8x128xf32>
    %27 = tpu.matmul %26, %25, %cst_23 {dimension_numbers = #tpu.dot_dimension_numbers<[1], [0], [0], [1], [0, 0, 1, 1], [], []>} : vector<8x96xf32>, vector<96x128xf32>, vector<8x128xf32> -> vector<8x128xf32>
    %c0_24 = arith.constant 0 : index
    %c0_25 = arith.constant 0 : index
    %28 = vector.load %arg10[%c0_24, %c0_25] : memref<8x1xf32, #tpu.memory_space<vmem>>, vector<8x1xf32>
    %29 = vector.broadcast %28 : vector<8x1xf32> to vector<8x128xf32>
    %30 = arith.addf %27, %29 : vector<8x128xf32>
    %cst_26 = arith.constant 0.000000e+00 : f32
    %31 = vector.broadcast %cst_26 : f32 to vector<8x128xf32>
    %32 = arith.maximumf %30, %31 : vector<8x128xf32>
    %c0_27 = arith.constant 0 : index
    %c0_28 = arith.constant 0 : index
    %33 = vector.load %arg11[%c0_27, %c0_28] : memref<6x8xf32, #tpu.memory_space<vmem>>, vector<6x8xf32>
    %cst_29 = arith.constant dense<0.000000e+00> : vector<6x128xf32>
    %34 = tpu.matmul %33, %32, %cst_29 {dimension_numbers = #tpu.dot_dimension_numbers<[1], [0], [0], [1], [0, 0, 1, 1], [], []>} : vector<6x8xf32>, vector<8x128xf32>, vector<6x128xf32> -> vector<6x128xf32>
    %c0_30 = arith.constant 0 : index
    %c0_31 = arith.constant 0 : index
    %35 = vector.load %arg12[%c0_30, %c0_31] : memref<6x1xf32, #tpu.memory_space<vmem>>, vector<6x1xf32>
    %36 = vector.broadcast %35 : vector<6x1xf32> to vector<6x128xf32>
    %37 = arith.addf %34, %36 : vector<6x128xf32>
    %c0_32 = arith.constant 0 : index
    %c0_33 = arith.constant 0 : index
    %c0_34 = arith.constant 0 : index
    %38 = vector.load %arg14[%c0_32, %c0_33, %c0_34] : memref<1x6x128xf32, #tpu.memory_space<vmem>>, vector<1x6x128xf32>
    %39 = vector.shape_cast %38 : vector<1x6x128xf32> to vector<6x128xf32>
    %40 = vector.shape_cast %37 : vector<6x128xf32> to vector<1x6x128xf32>
    tpu.vector_store %arg14[%c0_32, %c0_33, %c0_34], %40 {strides = array<i32>} : memref<1x6x128xf32, #tpu.memory_space<vmem>>, vector<1x6x128xf32>,
    return
  }
  func.func @transform_0(%arg0: i32, %arg1: i32) -> (i32, i32, i32) {
    %c0_i32 = arith.constant 0 : i32
    %c0_i32_0 = arith.constant 0 : i32
    return %arg0, %c0_i32, %arg1 : i32, i32, i32
  }
  func.func @transform_1(%arg0: i32, %arg1: i32) -> (i32, i32, i32) {
    %c0_i32 = arith.constant 0 : i32
    %c0_i32_0 = arith.constant 0 : i32
    return %arg0, %c0_i32, %arg1 : i32, i32, i32
  }
  func.func @transform_2(%arg0: i32, %arg1: i32) -> (i32, i32, i32, i32) {
    %c0_i32 = arith.constant 0 : i32
    %c0_i32_0 = arith.constant 0 : i32
    %c0_i32_1 = arith.constant 0 : i32
    return %arg0, %arg1, %c0_i32, %c0_i32_0 : i32, i32, i32, i32
  }
  func.func @transform_3(%arg0: i32, %arg1: i32) -> (i32, i32) {
    %c0_i32 = arith.constant 0 : i32
    %c0_i32_0 = arith.constant 0 : i32
    %c0_i32_1 = arith.constant 0 : i32
    return %c0_i32, %c0_i32_0 : i32, i32
  }
  func.func @transform_4(%arg0: i32, %arg1: i32) -> (i32, i32) {
    %c0_i32 = arith.constant 0 : i32
    %c0_i32_0 = arith.constant 0 : i32
    %c0_i32_1 = arith.constant 0 : i32
    return %c0_i32, %c0_i32_0 : i32, i32
  }
  func.func @transform_5(%arg0: i32, %arg1: i32) -> (i32, i32) {
    %c0_i32 = arith.constant 0 : i32
    %c0_i32_0 = arith.constant 0 : i32
    %c0_i32_1 = arith.constant 0 : i32
    return %c0_i32, %c0_i32_0 : i32, i32
  }
  func.func @transform_6(%arg0: i32, %arg1: i32) -> (i32, i32) {
    %c0_i32 = arith.constant 0 : i32
    %c0_i32_0 = arith.constant 0 : i32
    %c0_i32_1 = arith.constant 0 : i32
    return %c0_i32, %c0_i32_0 : i32, i32
  }
  func.func @transform_7(%arg0: i32, %arg1: i32) -> (i32, i32) {
    %c0_i32 = arith.constant 0 : i32
    %c0_i32_0 = arith.constant 0 : i32
    %c0_i32_1 = arith.constant 0 : i32
    return %c0_i32, %c0_i32_0 : i32, i32
  }
  func.func @transform_8(%arg0: i32, %arg1: i32) -> (i32, i32) {
    %c0_i32 = arith.constant 0 : i32
    %c0_i32_0 = arith.constant 0 : i32
    %c0_i32_1 = arith.constant 0 : i32
    return %c0_i32, %c0_i32_0 : i32, i32
  }
  func.func @transform_9(%arg0: i32, %arg1: i32) -> (i32, i32) {
    %c0_i32 = arith.constant 0 : i32
    %c0_i32_0 = arith.constant 0 : i32
    %c0_i32_1 = arith.constant 0 : i32
    return %c0_i32, %c0_i32_0 : i32, i32
  }
  func.func @transform_10(%arg0: i32, %arg1: i32) -> (i32, i32) {
    %c0_i32 = arith.constant 0 : i32
    %c0_i32_0 = arith.constant 0 : i32
    %c0_i32_1 = arith.constant 0 : i32
    return %c0_i32, %c0_i32_0 : i32, i32
  }
  func.func @transform_11(%arg0: i32, %arg1: i32) -> (i32, i32, i32) {
    %c0_i32 = arith.constant 0 : i32
    %c0_i32_0 = arith.constant 0 : i32
    return %arg0, %c0_i32, %arg1 : i32, i32, i32
  }
  func.func @transform_12(%arg0: i32, %arg1: i32) -> (i32, i32, i32) {
    %c0_i32 = arith.constant 0 : i32
    %c0_i32_0 = arith.constant 0 : i32
    return %arg0, %c0_i32, %arg1 : i32, i32, i32
  }
}

</mosaic_0001>

<llo_original>
// kernel: tpu_custom_call.1
$region0: #{tpu_custom_call.1}
  #allocation0 [shape = 'u32[]', space=smem, size = 0x4, offset = 0x4, fixed_abs, tag = 'smem constant byte address 0x4 - core index']
  #allocation1 [shape = 'u32[72,128]{1,0:T(1,128)}', space=vmem, size = 0x9000, scoped, tag = 'internal scratch']
  %s0 = inlined_call_operand.vmem [shape: f32[2,32,128], index: 0, kind: input, shape index: {}]
  %s1 = inlined_call_operand.hbm [shape: f32[2,32,128], index: 1, kind: input, shape index: {}]
  %s2 = inlined_call_operand.vmem [shape: f32[2,1,32,2], index: 2, kind: input, shape index: {}]
  %s3 = inlined_call_operand.vmem [shape: f32[8,32], index: 3, kind: input, shape index: {}]
  %s4 = inlined_call_operand.vmem [shape: f32[8,1], index: 4, kind: input, shape index: {}]
  %s5 = inlined_call_operand.vmem [shape: f32[6,8], index: 5, kind: input, shape index: {}]
  %s6 = inlined_call_operand.vmem [shape: f32[6,1], index: 6, kind: input, shape index: {}]
  %s7 = inlined_call_operand.vmem [shape: f32[8,96], index: 7, kind: input, shape index: {}]
  %s8 = inlined_call_operand.vmem [shape: f32[8,1], index: 8, kind: input, shape index: {}]
  %s9 = inlined_call_operand.vmem [shape: f32[6,8], index: 9, kind: input, shape index: {}]
  %s10 = inlined_call_operand.vmem [shape: f32[6,1], index: 10, kind: input, shape index: {}]
  %s11 = inlined_call_operand.vmem [shape: f32[2,6,128], index: 11, kind: output, shape index: {0}]
  %s12 = inlined_call_operand.vmem [shape: f32[2,6,128], index: 12, kind: output, shape index: {1}]
  %13 = xla_tuple %s11, %s12
  %s14 = sld [smem:[#allocation0]]
  $region89: #{tpu_custom_call.1} parent=0
    _
  %s16 = ssub.s32 1, %s14
  %s17 = scalar_select 0, %s16, %s14
  $region1: #{tpu_custom_call.1} parent=0
    #allocation2 [shape = 'u8[32768]{0}', space=vmem, size = 0x8000, scoped, tag = 'input window, operand 1']
    #allocation3 [shape = 's32[2]{0}', space=sflag, size = 0x8, scoped, tag = 'scoped memory for tpu_custom_call.1']
    %18 = vsyncpa [#allocation3], 0
    %s19 = scalar_lea.sflag [#allocation3], 1
    %20 = vsyncpa %s19, 0
    loop: start=0, step=1, limit=4
    $region2: #{tpu_custom_call.1} parent=1 // loop_pre_header
      _
    $region3: #{tpu_custom_call.1} parent=1 // loop_header
      %s22 = sphi 0, %s26
      %p23 = scmp.ge.s32.totalorder %s22, 4
      %s29 = sphi 0, %s41
      %s30 = sphi 0, %s37
      %s31 = sphi 0, %s29
      %s32 = sphi 0, %s30
      %s33 = sphi 0, %s31
      %s34 = sphi 0, %s32
      %s46 = sphi 0, %s48
      %s49 = sphi 0, %s46
      %s50 = sphi 0, %s49
      %s66 = sphi 0, %s50
      %s74 = sphi 0, %s76
      %s77 = sphi 0, %s74
      %s78 = sphi 0, %s77
      %s94 = sphi 0, %s78
      %s102 = sphi 0, %s104
      %s105 = sphi 0, %s102
      %s106 = sphi 0, %s105
      %s122 = sphi 0, %s106
      %s126 = sphi 0, %s126
      %s128 = sphi 0, %s126
      %s129 = sphi 0, %s128
      %s143 = sphi 0, %s129
      %s147 = sphi 0, %s147
      %s149 = sphi 0, %s147
      %s150 = sphi 0, %s149
      %s164 = sphi 0, %s150
      %s168 = sphi 0, %s168
      %s170 = sphi 0, %s168
      %s171 = sphi 0, %s170
      %s185 = sphi 0, %s171
      %s189 = sphi 0, %s189
      %s191 = sphi 0, %s189
      %s192 = sphi 0, %s191
      %s206 = sphi 0, %s192
      %s210 = sphi 0, %s210
      %s212 = sphi 0, %s210
      %s213 = sphi 0, %s212
      %s227 = sphi 0, %s213
      %s231 = sphi 0, %s231
      %s233 = sphi 0, %s231
      %s234 = sphi 0, %s233
      %s248 = sphi 0, %s234
      %s252 = sphi 0, %s252
      %s254 = sphi 0, %s252
      %s255 = sphi 0, %s254
      %s269 = sphi 0, %s255
      %s273 = sphi 0, %s273
      %s275 = sphi 0, %s273
      %s276 = sphi 0, %s275
      %s290 = sphi 0, %s276
      %s298 = sphi 0, %s300
      %s301 = sphi 0, %s298
      %s302 = sphi 0, %s301
      %s318 = sphi 0, %s302
      %s326 = sphi 0, %s328
      %s329 = sphi 0, %s326
      %s330 = sphi 0, %s329
      %s346 = sphi 0, %s330
    $region4: #{tpu_custom_call.1} parent=1 // loop_header_branch
      %25 = sbr.rel (%p23) target = $region8
    $region5: #{tpu_custom_call.1} parent=1 // loop_body
      %s27 = ssub.s32 %s22, 1
      %s28 = ssub.s32 %s22, 2
      %s35 = sadd.s32 1, %s30
      %p36 = scmp.ge.s32.totalorder %s35, 1
      %s37 = scalar_select %p36, 0, %s35
      %s38 = sadd.s32 1, %s29
      %s39 = scalar_select %p36, %s38, %s29
      %p40 = scmp.ge.s32.totalorder %s39, 2
      %s41 = scalar_select %p40, 0, %s39
      %s42 = ssub.s32 %s29, %s41
      %s43 = ssub.s32 %s30, %s37
      %s44 = sor.u32 %s42, %s43
      %p45 = scmp.eq.s32.totalorder %s44, 0
      %s47 = sadd.s32 %s46, 1
      %s48 = scalar_select %p45, %s46, %s47
      %p51 = pneg %p45
      %p52 = scmp.eq.s32.totalorder %s22, 1
      %p53 = por %p51, %p52
      %p54 = scmp.ne.s32.totalorder %s46, %s49
      %p55 = scmp.eq.s32.totalorder %s22, 0
      %p56 = por %p54, %p55
      %p57 = scmp.ne.s32.totalorder %s46, %s49
      %p58 = scmp.eq.s32.totalorder %s27, 1
      %p59 = por %p57, %p58
      %p60 = scmp.ne.s32.totalorder %s49, %s50
      %p61 = scmp.eq.s32.totalorder %s27, 0
      %p62 = por %p60, %p61
      %p63 = scmp.ne.s32.totalorder %s49, %s50
      %p64 = scmp.eq.s32.totalorder %s28, 1
      %p65 = por %p63, %p64
      %p67 = scmp.ne.s32.totalorder %s50, %s66
      %p68 = scmp.eq.s32.totalorder %s28, 0
      %p69 = por %p67, %p68
      %s70 = ssub.s32 %s29, %s41
      %s71 = ssub.s32 %s30, %s37
      %s72 = sor.u32 %s70, %s71
      %p73 = scmp.eq.s32.totalorder %s72, 0
      %s75 = sadd.s32 %s74, 1
      %s76 = scalar_select %p73, %s74, %s75
      %p79 = pneg %p73
      %p80 = scmp.eq.s32.totalorder %s22, 1
      %p81 = por %p79, %p80
      %p82 = scmp.ne.s32.totalorder %s74, %s77
      %p83 = scmp.eq.s32.totalorder %s22, 0
      %p84 = por %p82, %p83
      %p85 = scmp.ne.s32.totalorder %s74, %s77
      %p86 = scmp.eq.s32.totalorder %s27, 1
      %p87 = por %p85, %p86
      %p88 = scmp.ne.s32.totalorder %s77, %s78
      %p89 = scmp.eq.s32.totalorder %s27, 0
      %p90 = por %p88, %p89
      %p91 = scmp.ne.s32.totalorder %s77, %s78
      %p92 = scmp.eq.s32.totalorder %s28, 1
      %p93 = por %p91, %p92
      %p95 = scmp.ne.s32.totalorder %s78, %s94
      %p96 = scmp.eq.s32.totalorder %s28, 0
      %p97 = por %p95, %p96
      %s98 = ssub.s32 %s29, %s41
      %s99 = ssub.s32 %s30, %s37
      %s100 = sor.u32 %s98, %s99
      %p101 = scmp.eq.s32.totalorder %s100, 0
      %s103 = sadd.s32 %s102, 1
      %s104 = scalar_select %p101, %s102, %s103
      %p107 = pneg %p101
      %p108 = scmp.eq.s32.totalorder %s22, 1
      %p109 = por %p107, %p108
      %p110 = scmp.ne.s32.totalorder %s102, %s105
      %p111 = scmp.eq.s32.totalorder %s22, 0
      %p112 = por %p110, %p111
      %p113 = scmp.ne.s32.totalorder %s102, %s105
      %p114 = scmp.eq.s32.totalorder %s27, 1
      %p115 = por %p113, %p114
      %p116 = scmp.ne.s32.totalorder %s105, %s106
      %p117 = scmp.eq.s32.totalorder %s27, 0
      %p118 = por %p116, %p117
      %p119 = scmp.ne.s32.totalorder %s105, %s106
      %p120 = scmp.eq.s32.totalorder %s28, 1
      %p121 = por %p119, %p120
      %p123 = scmp.ne.s32.totalorder %s106, %s122
      %p124 = scmp.eq.s32.totalorder %s28, 0
      %p125 = por %p123, %p124
      %s127 = sadd.s32 %s126, 1
      %p130 = scmp.eq.s32.totalorder %s22, 1
      %p131 = scmp.ne.s32.totalorder %s126, %s128
      %p132 = scmp.eq.s32.totalorder %s22, 0
      %p133 = por %p131, %p132
      %p134 = scmp.ne.s32.totalorder %s126, %s128
      %p135 = scmp.eq.s32.totalorder %s27, 1
      %p136 = por %p134, %p135
      %p137 = scmp.ne.s32.totalorder %s128, %s129
      %p138 = scmp.eq.s32.totalorder %s27, 0
      %p139 = por %p137, %p138
      %p140 = scmp.ne.s32.totalorder %s128, %s129
      %p141 = scmp.eq.s32.totalorder %s28, 1
      %p142 = por %p140, %p141
      %p144 = scmp.ne.s32.totalorder %s129, %s143
      %p145 = scmp.eq.s32.totalorder %s28, 0
      %p146 = por %p144, %p145
      %s148 = sadd.s32 %s147, 1
      %p151 = scmp.eq.s32.totalorder %s22, 1
      %p152 = scmp.ne.s32.totalorder %s147, %s149
      %p153 = scmp.eq.s32.totalorder %s22, 0
      %p154 = por %p152, %p153
      %p155 = scmp.ne.s32.totalorder %s147, %s149
      %p156 = scmp.eq.s32.totalorder %s27, 1
      %p157 = por %p155, %p156
      %p158 = scmp.ne.s32.totalorder %s149, %s150
      %p159 = scmp.eq.s32.totalorder %s27, 0
      %p160 = por %p158, %p159
      %p161 = scmp.ne.s32.totalorder %s149, %s150
      %p162 = scmp.eq.s32.totalorder %s28, 1
      %p163 = por %p161, %p162
      %p165 = scmp.ne.s32.totalorder %s150, %s164
      %p166 = scmp.eq.s32.totalorder %s28, 0
      %p167 = por %p165, %p166
      %s169 = sadd.s32 %s168, 1
      %p172 = scmp.eq.s32.totalorder %s22, 1
      %p173 = scmp.ne.s32.totalorder %s168, %s170
      %p174 = scmp.eq.s32.totalorder %s22, 0
      %p175 = por %p173, %p174
      %p176 = scmp.ne.s32.totalorder %s168, %s170
      %p177 = scmp.eq.s32.totalorder %s27, 1
      %p178 = por %p176, %p177
      %p179 = scmp.ne.s32.totalorder %s170, %s171
      %p180 = scmp.eq.s32.totalorder %s27, 0
      %p181 = por %p179, %p180
      %p182 = scmp.ne.s32.totalorder %s170, %s171
      %p183 = scmp.eq.s32.totalorder %s28, 1
      %p184 = por %p182, %p183
      %p186 = scmp.ne.s32.totalorder %s171, %s185
      %p187 = scmp.eq.s32.totalorder %s28, 0
      %p188 = por %p186, %p187
      %s190 = sadd.s32 %s189, 1
      %p193 = scmp.eq.s32.totalorder %s22, 1
      %p194 = scmp.ne.s32.totalorder %s189, %s191
      %p195 = scmp.eq.s32.totalorder %s22, 0
      %p196 = por %p194, %p195
      %p197 = scmp.ne.s32.totalorder %s189, %s191
      %p198 = scmp.eq.s32.totalorder %s27, 1
      %p199 = por %p197, %p198
      %p200 = scmp.ne.s32.totalorder %s191, %s192
      %p201 = scmp.eq.s32.totalorder %s27, 0
      %p202 = por %p200, %p201
      %p203 = scmp.ne.s32.totalorder %s191, %s192
      %p204 = scmp.eq.s32.totalorder %s28, 1
      %p205 = por %p203, %p204
      %p207 = scmp.ne.s32.totalorder %s192, %s206
      %p208 = scmp.eq.s32.totalorder %s28, 0
      %p209 = por %p207, %p208
      %s211 = sadd.s32 %s210, 1
      %p214 = scmp.eq.s32.totalorder %s22, 1
      %p215 = scmp.ne.s32.totalorder %s210, %s212
      %p216 = scmp.eq.s32.totalorder %s22, 0
      %p217 = por %p215, %p216
      %p218 = scmp.ne.s32.totalorder %s210, %s212
      %p219 = scmp.eq.s32.totalorder %s27, 1
      %p220 = por %p218, %p219
      %p221 = scmp.ne.s32.totalorder %s212, %s213
      %p222 = scmp.eq.s32.totalorder %s27, 0
      %p223 = por %p221, %p222
      %p224 = scmp.ne.s32.totalorder %s212, %s213
      %p225 = scmp.eq.s32.totalorder %s28, 1
      %p226 = por %p224, %p225
      %p228 = scmp.ne.s32.totalorder %s213, %s227
      %p229 = scmp.eq.s32.totalorder %s28, 0
      %p230 = por %p228, %p229
      %s232 = sadd.s32 %s231, 1
      %p235 = scmp.eq.s32.totalorder %s22, 1
      %p236 = scmp.ne.s32.totalorder %s231, %s233
      %p237 = scmp.eq.s32.totalorder %s22, 0
      %p238 = por %p236, %p237
      %p239 = scmp.ne.s32.totalorder %s231, %s233
      %p240 = scmp.eq.s32.totalorder %s27, 1
      %p241 = por %p239, %p240
      %p242 = scmp.ne.s32.totalorder %s233, %s234
      %p243 = scmp.eq.s32.totalorder %s27, 0
      %p244 = por %p242, %p243
      %p245 = scmp.ne.s32.totalorder %s233, %s234
      %p246 = scmp.eq.s32.totalorder %s28, 1
      %p247 = por %p245, %p246
      %p249 = scmp.ne.s32.totalorder %s234, %s248
      %p250 = scmp.eq.s32.totalorder %s28, 0
      %p251 = por %p249, %p250
      %s253 = sadd.s32 %s252, 1
      %p256 = scmp.eq.s32.totalorder %s22, 1
      %p257 = scmp.ne.s32.totalorder %s252, %s254
      %p258 = scmp.eq.s32.totalorder %s22, 0
      %p259 = por %p257, %p258
      %p260 = scmp.ne.s32.totalorder %s252, %s254
      %p261 = scmp.eq.s32.totalorder %s27, 1
      %p262 = por %p260, %p261
      %p263 = scmp.ne.s32.totalorder %s254, %s255
      %p264 = scmp.eq.s32.totalorder %s27, 0
      %p265 = por %p263, %p264
      %p266 = scmp.ne.s32.totalorder %s254, %s255
      %p267 = scmp.eq.s32.totalorder %s28, 1
      %p268 = por %p266, %p267
      %p270 = scmp.ne.s32.totalorder %s255, %s269
      %p271 = scmp.eq.s32.totalorder %s28, 0
      %p272 = por %p270, %p271
      %s274 = sadd.s32 %s273, 1
      %p277 = scmp.eq.s32.totalorder %s22, 1
      %p278 = scmp.ne.s32.totalorder %s273, %s275
      %p279 = scmp.eq.s32.totalorder %s22, 0
      %p280 = por %p278, %p279
      %p281 = scmp.ne.s32.totalorder %s273, %s275
      %p282 = scmp.eq.s32.totalorder %s27, 1
      %p283 = por %p281, %p282
      %p284 = scmp.ne.s32.totalorder %s275, %s276
      %p285 = scmp.eq.s32.totalorder %s27, 0
      %p286 = por %p284, %p285
      %p287 = scmp.ne.s32.totalorder %s275, %s276
      %p288 = scmp.eq.s32.totalorder %s28, 1
      %p289 = por %p287, %p288
      %p291 = scmp.ne.s32.totalorder %s276, %s290
      %p292 = scmp.eq.s32.totalorder %s28, 0
      %p293 = por %p291, %p292
      %s294 = ssub.s32 %s29, %s41
      %s295 = ssub.s32 %s30, %s37
      %s296 = sor.u32 %s294, %s295
      %p297 = scmp.eq.s32.totalorder %s296, 0
      %s299 = sadd.s32 %s298, 1
      %s300 = scalar_select %p297, %s298, %s299
      %p303 = pneg %p297
      %p304 = scmp.eq.s32.totalorder %s22, 1
      %p305 = por %p303, %p304
      %p306 = scmp.ne.s32.totalorder %s298, %s301
      %p307 = scmp.eq.s32.totalorder %s22, 0
      %p308 = por %p306, %p307
      %p309 = scmp.ne.s32.totalorder %s298, %s301
      %p310 = scmp.eq.s32.totalorder %s27, 1
      %p311 = por %p309, %p310
      %p312 = scmp.ne.s32.totalorder %s301, %s302
      %p313 = scmp.eq.s32.totalorder %s27, 0
      %p314 = por %p312, %p313
      %p315 = scmp.ne.s32.totalorder %s301, %s302
      %p316 = scmp.eq.s32.totalorder %s28, 1
      %p317 = por %p315, %p316
      %p319 = scmp.ne.s32.totalorder %s302, %s318
      %p320 = scmp.eq.s32.totalorder %s28, 0
      %p321 = por %p319, %p320
      %s322 = ssub.s32 %s29, %s41
      %s323 = ssub.s32 %s30, %s37
      %s324 = sor.u32 %s322, %s323
      %p325 = scmp.eq.s32.totalorder %s324, 0
      %s327 = sadd.s32 %s326, 1
      %s328 = scalar_select %p325, %s326, %s327
      %p331 = pneg %p325
      %p332 = scmp.eq.s32.totalorder %s22, 1
      %p333 = por %p331, %p332
      %p334 = scmp.ne.s32.totalorder %s326, %s329
      %p335 = scmp.eq.s32.totalorder %s22, 0
      %p336 = por %p334, %p335
      %p337 = scmp.ne.s32.totalorder %s326, %s329
      %p338 = scmp.eq.s32.totalorder %s27, 1
      %p339 = por %p337, %p338
      %p340 = scmp.ne.s32.totalorder %s329, %s330
      %p341 = scmp.eq.s32.totalorder %s27, 0
      %p342 = por %p340, %p341
      %p343 = scmp.ne.s32.totalorder %s329, %s330
      %p344 = scmp.eq.s32.totalorder %s28, 1
      %p345 = por %p343, %p344
      %p347 = scmp.ne.s32.totalorder %s330, %s346
      %p348 = scmp.eq.s32.totalorder %s28, 0
      %p349 = por %p347, %p348
      %p350 = scmp.le.s32.totalorder 1, %s22
      %p351 = scmp.lt.s32.totalorder %s22, 3
      %p352 = pnand %p350, %p351
      %p353 = pneg %p352
      // Predicated region
      $region9: #{tpu_custom_call.1} parent=5 // pred_check
        _
      $region10: #{tpu_custom_call.1} parent=5 // pred_check_branch
        %355 = sbr.rel (%p352) target = $region12
      $region11: #{tpu_custom_call.1} parent=5 // pred_region
        %s356 = ssub.s32 %s22, 1
        // Predicated region
        $region13: #{tpu_custom_call.1} parent=11 // pred_check
          %p357 = pneg %p139
        $region14: #{tpu_custom_call.1} parent=11 // pred_check_branch
          %359 = sbr.rel (%p357) target = $region16
        $region15: #{tpu_custom_call.1} parent=11 // pred_region
          _
        $region16: #{tpu_custom_call.1} parent=11 // pred_fallthru
          _
        // Predicated region
        $region17: #{tpu_custom_call.1} parent=11 // pred_check
          %p360 = pneg %p160
        $region18: #{tpu_custom_call.1} parent=11 // pred_check_branch
          %362 = sbr.rel (%p360) target = $region20
        $region19: #{tpu_custom_call.1} parent=11 // pred_region
          _
        $region20: #{tpu_custom_call.1} parent=11 // pred_fallthru
          _
        // Predicated region
        $region21: #{tpu_custom_call.1} parent=11 // pred_check
          %p363 = pneg %p181
        $region22: #{tpu_custom_call.1} parent=11 // pred_check_branch
          %365 = sbr.rel (%p363) target = $region24
        $region23: #{tpu_custom_call.1} parent=11 // pred_region
          _
        $region24: #{tpu_custom_call.1} parent=11 // pred_fallthru
          _
        // Predicated region
        $region25: #{tpu_custom_call.1} parent=11 // pred_check
          %p366 = pneg %p202
        $region26: #{tpu_custom_call.1} parent=11 // pred_check_branch
          %368 = sbr.rel (%p366) target = $region28
        $region27: #{tpu_custom_call.1} parent=11 // pred_region
          _
        $region28: #{tpu_custom_call.1} parent=11 // pred_fallthru
          _
        // Predicated region
        $region29: #{tpu_custom_call.1} parent=11 // pred_check
          %p369 = pneg %p223
        $region30: #{tpu_custom_call.1} parent=11 // pred_check_branch
          %371 = sbr.rel (%p369) target = $region32
        $region31: #{tpu_custom_call.1} parent=11 // pred_region
          _
        $region32: #{tpu_custom_call.1} parent=11 // pred_fallthru
          _
        // Predicated region
        $region33: #{tpu_custom_call.1} parent=11 // pred_check
          %p372 = pneg %p244
        $region34: #{tpu_custom_call.1} parent=11 // pred_check_branch
          %374 = sbr.rel (%p372) target = $region36
        $region35: #{tpu_custom_call.1} parent=11 // pred_region
          _
        $region36: #{tpu_custom_call.1} parent=11 // pred_fallthru
          _
        // Predicated region
        $region37: #{tpu_custom_call.1} parent=11 // pred_check
          %p375 = pneg %p265
        $region38: #{tpu_custom_call.1} parent=11 // pred_check_branch
          %377 = sbr.rel (%p375) target = $region40
        $region39: #{tpu_custom_call.1} parent=11 // pred_region
          _
        $region40: #{tpu_custom_call.1} parent=11 // pred_fallthru
          _
        // Predicated region
        $region41: #{tpu_custom_call.1} parent=11 // pred_check
          %p378 = pneg %p286
        $region42: #{tpu_custom_call.1} parent=11 // pred_check_branch
          %380 = sbr.rel (%p378) target = $region44
        $region43: #{tpu_custom_call.1} parent=11 // pred_region
          _
        $region44: #{tpu_custom_call.1} parent=11 // pred_fallthru
          _
      $region12: #{tpu_custom_call.1} parent=5 // pred_fallthru
        _
      %p381 = scmp.lt.s32.totalorder %s22, 2
      // Predicated region
      $region45: #{tpu_custom_call.1} parent=5 // pred_check
        %p382 = pneg %p381
      $region46: #{tpu_custom_call.1} parent=5 // pred_check_branch
        %384 = sbr.rel (%p382) target = $region48
      $region47: #{tpu_custom_call.1} parent=5 // pred_region
        // Predicated region
        $region49: #{tpu_custom_call.1} parent=47 // pred_check
          %p385 = pneg %p56
        $region50: #{tpu_custom_call.1} parent=47 // pred_check_branch
          %387 = sbr.rel (%p385) target = $region52
        $region51: #{tpu_custom_call.1} parent=47 // pred_region
          %p388 = scmp.lt.s32.totalorder %s29, 1
          %s389 = scalar_select %p388, %s29, 1
          %p390 = scmp.lt.s32.totalorder %s30, 0
          %s391 = scalar_select %p390, %s30, 0
          %s392 = smul.addr %s389, 4
          %s393 = sadd.s32 %s391, %s392
          %s394 = smul.addr %s393, 8
          %s395 = scalar_lea.vmem %s0, %s394
        $region52: #{tpu_custom_call.1} parent=47 // pred_fallthru
          _
        // Predicated region
        $region53: #{tpu_custom_call.1} parent=47 // pred_check
          %p396 = pneg %p84
        $region54: #{tpu_custom_call.1} parent=47 // pred_check_branch
          %398 = sbr.rel (%p396) target = $region56
        $region55: #{tpu_custom_call.1} parent=47 // pred_region
          %s399 = sand.u32 %s74, 1
          %s400 = scalar_lea.sflag [#allocation3], %s399
          %s401 = sand.u32 %s74, 1
          %s402 = smul.addr %s401, 32
          %s403 = scalar_lea.vmem [#allocation2], %s402
          %405 = vsyncadd %s400, 0
          %s406 = smul.addr %s29, 4
          %s407 = sadd.s32 %s30, %s406
          %s408 = smul.addr %s407, 8
          %s409 = scalar_lea.hbm %s1, %s408
          %s410 = sshll.u32 %s409, 4
          %s411 = int_to_ptr.hbm [resolvable:$true] %s410
          %s412 = sshll.u32 %s403, 4
          %s413 = int_to_ptr.vmem [resolvable:$true] %s412
          %418 = dma.hbm_to_vmem [thread:$0]  %s411, 512, %s413, %s400, 128, 128, 8
        $region56: #{tpu_custom_call.1} parent=47 // pred_fallthru
          _
        // Predicated region
        $region57: #{tpu_custom_call.1} parent=47 // pred_check
          %p419 = pneg %p112
        $region58: #{tpu_custom_call.1} parent=47 // pred_check_branch
          %421 = sbr.rel (%p419) target = $region60
        $region59: #{tpu_custom_call.1} parent=47 // pred_region
          %p422 = scmp.lt.s32.totalorder %s29, 1
          %s423 = scalar_select %p422, %s29, 1
          %p424 = scmp.lt.s32.totalorder %s30, 0
          %s425 = scalar_select %p424, %s30, 0
          %s426 = smul.addr %s425, 4
          %s427 = smul.addr %s423, 4
          %s428 = sadd.s32 %s426, %s427
          %s429 = smul.addr %s428, 8
          %s430 = scalar_lea.vmem %s2, %s429
        $region60: #{tpu_custom_call.1} parent=47 // pred_fallthru
          _
      $region48: #{tpu_custom_call.1} parent=5 // pred_fallthru
        _
      %p431 = scmp.le.s32.totalorder 1, %s22
      %p432 = scmp.lt.s32.totalorder %s22, 3
      %p433 = pnand %p431, %p432
      %p434 = pneg %p433
      // Predicated region
      $region61: #{tpu_custom_call.1} parent=5 // pred_check
        _
      $region62: #{tpu_custom_call.1} parent=5 // pred_check_branch
        %436 = sbr.rel (%p433) target = $region64
      $region63: #{tpu_custom_call.1} parent=5 // pred_region
        %s437 = ssub.s32 %s22, 1
        %s438 = sand.u32 %s77, 1
        %s439 = scalar_lea.sflag [#allocation3], %s438
        %s440 = sand.u32 %s77, 1
        %s441 = smul.addr %s440, 32
        %s442 = scalar_lea.vmem [#allocation2], %s441
        // Predicated region
        $region65: #{tpu_custom_call.1} parent=63 // pred_check
          %p443 = pneg %p90
        $region66: #{tpu_custom_call.1} parent=63 // pred_check_branch
          %445 = sbr.rel (%p443) target = $region68
        $region67: #{tpu_custom_call.1} parent=63 // pred_region
          %447 = dma.done %s439, 512
        $region68: #{tpu_custom_call.1} parent=63 // pred_fallthru
          _
        %p448 = scmp.lt.s32.totalorder %s31, 1
        %s449 = scalar_select %p448, %s31, 1
        %p450 = scmp.lt.s32.totalorder %s32, 0
        %s451 = scalar_select %p450, %s32, 0
        %s452 = smul.addr %s449, 4
        %s453 = sadd.s32 %s451, %s452
        %s454 = smul.addr %s453, 8
        %s455 = scalar_lea.vmem %s0, %s454
        %p456 = pneg %p62
        %p457 = pneg %p59
        %s458 = sand.u32 %s77, 1
        %s459 = scalar_lea.sflag [#allocation3], %s458
        %s460 = sand.u32 %s77, 1
        %s461 = smul.addr %s460, 32
        %s462 = scalar_lea.vmem [#allocation2], %s461
        %p463 = pneg %p90
        %p464 = pneg %p87
        %p465 = scmp.lt.s32.totalorder %s31, 1
        %s466 = scalar_select %p465, %s31, 1
        %p467 = scmp.lt.s32.totalorder %s32, 0
        %s468 = scalar_select %p467, %s32, 0
        %s469 = smul.addr %s468, 4
        %s470 = smul.addr %s466, 4
        %s471 = sadd.s32 %s469, %s470
        %s472 = smul.addr %s471, 8
        %s473 = scalar_lea.vmem %s2, %s472
        %p474 = pneg %p118
        %p475 = pneg %p115
        %p476 = pneg %p139
        %p477 = pneg %p136
        %p478 = pneg %p160
        %p479 = pneg %p157
        %p480 = pneg %p181
        %p481 = pneg %p178
        %p482 = pneg %p202
        %p483 = pneg %p199
        %p484 = pneg %p223
        %p485 = pneg %p220
        %p486 = pneg %p244
        %p487 = pneg %p241
        %p488 = pneg %p265
        %p489 = pneg %p262
        %p490 = pneg %p286
        %p491 = pneg %p283
        %p492 = pneg %p314
        %p493 = pneg %p311
        %p494 = scmp.lt.s32.totalorder %s31, 1
        %s495 = scalar_select %p494, %s31, 1
        %p496 = scmp.lt.s32.totalorder %s32, 0
        %s497 = scalar_select %p496, %s32, 0
        %s498 = sadd.s32 %s497, %s495
        %s499 = smul.addr %s498, 8
        %s500 = scalar_lea.vmem %s11, %s499
        %p501 = pneg %p342
        %p502 = pneg %p339
        %p503 = scmp.lt.s32.totalorder %s31, 1
        %s504 = scalar_select %p503, %s31, 1
        %p505 = scmp.lt.s32.totalorder %s32, 0
        %s506 = scalar_select %p505, %s32, 0
        %s507 = sadd.s32 %s506, %s504
        %s508 = smul.addr %s507, 8
        %s509 = scalar_lea.vmem %s12, %s508
        %p510 = scmp.lt.s32.totalorder %s31, 1
        %s511 = scalar_select %p510, %s31, 1
        %p512 = scmp.lt.s32.totalorder %s32, 0
        %s513 = scalar_select %p512, %s32, 0
        %s514 = smul.addr %s511, 4
        %s515 = sadd.s32 %s513, %s514
        %s516 = smul.addr %s515, 8
        %s517 = scalar_lea.vmem %s0, %s516
        %p518 = scmp.lt.s32.totalorder %s31, 1
        %s519 = scalar_select %p518, %s31, 1
        %p520 = scmp.lt.s32.totalorder %s32, 0
        %s521 = scalar_select %p520, %s32, 0
        %s522 = smul.addr %s521, 4
        %s523 = smul.addr %s519, 4
        %s524 = sadd.s32 %s522, %s523
        %s525 = smul.addr %s524, 8
        %s526 = scalar_lea.vmem %s2, %s525
        %p527 = scmp.lt.s32.totalorder %s31, 1
        %s528 = scalar_select %p527, %s31, 1
        %p529 = scmp.lt.s32.totalorder %s32, 0
        %s530 = scalar_select %p529, %s32, 0
        %s531 = sadd.s32 %s530, %s528
        %s532 = smul.addr %s531, 8
        %s533 = scalar_lea.vmem %s11, %s532
        %p534 = scmp.lt.s32.totalorder %s31, 1
        %s535 = scalar_select %p534, %s31, 1
        %p536 = scmp.lt.s32.totalorder %s32, 0
        %s537 = scalar_select %p536, %s32, 0
        %s538 = sadd.s32 %s537, %s535
        %s539 = smul.addr %s538, 8
        %s540 = scalar_lea.vmem %s12, %s539
        %v541 = vld [vmem:[%s517] sm:$0xff]
        %v542 = vld [vmem:[%s517 + $0x8] sm:$0xff]
        %v543 = vld [vmem:[%s517 + $0x10] sm:$0xff]
        %v544 = vld [vmem:[%s517 + $0x18] sm:$0xff]
        %v545 = vld [vmem:[%s442] sm:$0xff]
        %v546 = vld [vmem:[%s442 + $0x8] sm:$0xff]
        %v547 = vld [vmem:[%s442 + $0x10] sm:$0xff]
        %v548 = vld [vmem:[%s442 + $0x18] sm:$0xff]
        %v549 = vld [vmem:[%s526] sm:$0xff]
        %v550 = vld [vmem:[%s526 + $0x8] sm:$0xff]
        %v551 = vld [vmem:[%s526 + $0x10] sm:$0xff]
        %v552 = vld [vmem:[%s526 + $0x18] sm:$0xff]
        %v553 = vld [vmem:[%s3] sm:$0xff]
        %v554 = vld [vmem:[%s4] sm:$0xff]
        %556 = vset.pattern.permute.xlu0 0
        %557 = vperm.xlu0 %556, %v554
        %v558 = vpop.permute.xlu0 %557
        %vm560 = vcmask 261120
        %v562 = vsel %vm560, %v553, 0
        %564 = vmatpush.msra.mxu0 0.0
        %565 = vmatpush.msra.mxu0 0.0
        %566 = vmatpush.msra.mxu0 0.0
        %567 = vmatpush.msra.mxu0 0.0
        %568 = vmatpush.msra.mxu0 0.0
        %569 = vmatpush.msra.mxu0 0.0
        %570 = vmatpush.msra.mxu0 0.0
        %571 = vmatpush.msra.mxu0 0.0
        %572 = vmatpush.msra.mxu0 0.0
        %573 = vmatpush.msra.mxu0 0.0
        %574 = vmatpush.msra.mxu0 0.0
        %575 = vmatpush.msra.mxu0 0.0
        %576 = vmatpush.msra.mxu0 %v544
        %577 = vmatpush.msra.mxu0 %v543
        %578 = vmatpush.msra.mxu0 %v542
        %579 = vmatpush.msra.mxu0 %v541
        %580 = vmatmul.f32.gmra.mxu0 %v562
        %v581 = vpop.f32.mrf.mxu0
        %v582 = vadd.f32 %v558, %v581
        %583 = vdwg.mxu0
        %v584 = vld [vmem:[%s5] sm:$0x3f]
        %v585 = vld [vmem:[%s6] sm:$0x3f]
        %587 = vset.pattern.permute.xlu0 0
        %588 = vperm.xlu0 %587, %v585
        %v589 = vpop.permute.xlu0 %588
        %vm591 = vcmask 64512
        %v593 = vsel %vm591, %v584, 0
        %595 = vmatpush.msra.mxu0 0.0
        %596 = vmatpush.msra.mxu0 0.0
        %597 = vmatpush.msra.mxu0 0.0
        %598 = vmatpush.msra.mxu0 0.0
        %599 = vmatpush.msra.mxu0 0.0
        %600 = vmatpush.msra.mxu0 0.0
        %601 = vmatpush.msra.mxu0 0.0
        %602 = vmatpush.msra.mxu0 0.0
        %603 = vmatpush.msra.mxu0 0.0
        %604 = vmatpush.msra.mxu0 0.0
        %605 = vmatpush.msra.mxu0 0.0
        %606 = vmatpush.msra.mxu0 0.0
        %607 = vmatpush.msra.mxu0 0.0
        %608 = vmatpush.msra.mxu0 0.0
        %609 = vmatpush.msra.mxu0 0.0
        %610 = vmatpush.msra.mxu0 %v582
        %611 = vmatmul.f32.gmra.mxu0 %v593
        %v612 = vpop.f32.mrf.mxu0
        %v613 = vadd.f32 %v589, %v612
        %614 = vdwg.mxu0
        %615 = vst [vmem:[%s533] sm:$0x3f] %v613
        %620 = vrot.lane.b32.xlu0 %v545, 1
        %v621 = vpop.permute.xlu0 %620
        %622 = vrot.lane.b32.xlu0 %v546, 1
        %v623 = vpop.permute.xlu0 %622
        %624 = vrot.lane.b32.xlu0 %v547, 1
        %v625 = vpop.permute.xlu0 %624
        %626 = vrot.lane.b32.xlu0 %v548, 1
        %v627 = vpop.permute.xlu0 %626
        %vm632 = vcmask 7168
        %v633 = vsel %vm632, %v549, %v621
        %v634 = vsel %vm632, %v550, %v623
        %v635 = vsel %vm632, %v551, %v625
        %v636 = vsel %vm632, %v552, %v627
        %637 = vrot.lane.b32.xlu0 %v545, 127
        %v638 = vpop.permute.xlu0 %637
        %639 = vrot.lane.b32.xlu0 %v546, 127
        %v640 = vpop.permute.xlu0 %639
        %641 = vrot.lane.b32.xlu0 %v547, 127
        %v642 = vpop.permute.xlu0 %641
        %643 = vrot.lane.b32.xlu0 %v548, 127
        %v644 = vpop.permute.xlu0 %643
        %653 = vrot.lane.b32.xlu0 %v549, 126
        %v654 = vpop.permute.xlu0 %653
        %655 = vrot.lane.b32.xlu0 %v550, 126
        %v656 = vpop.permute.xlu0 %655
        %657 = vrot.lane.b32.xlu0 %v551, 126
        %v658 = vpop.permute.xlu0 %657
        %659 = vrot.lane.b32.xlu0 %v552, 126
        %v660 = vpop.permute.xlu0 %659
        %vm665 = vcmask 1039360
        %v666 = vsel %vm665, %v638, %v654
        %v667 = vsel %vm665, %v640, %v656
        %v668 = vsel %vm665, %v642, %v658
        %v669 = vsel %vm665, %v644, %v660
        %v670 = vld [vmem:[%s7] sm:$0xff]
        %v671 = vld [vmem:[%s8] sm:$0xff]
        %673 = vset.pattern.permute.xlu0 0
        %674 = vperm.xlu0 %673, %v671
        %v675 = vpop.permute.xlu0 %674
        %vm677 = vcmask 785408
        %v679 = vsel %vm677, %v670, 0
        %681 = vmatpush.msra.mxu0 0.0
        %682 = vmatpush.msra.mxu0 0.0
        %683 = vmatpush.msra.mxu0 0.0
        %684 = vmatpush.msra.mxu0 0.0
        %685 = vmatpush.msra.mxu0 %v669
        %686 = vmatpush.msra.mxu0 %v668
        %687 = vmatpush.msra.mxu0 %v667
        %688 = vmatpush.msra.mxu0 %v666
        %689 = vmatpush.msra.mxu0 %v548
        %690 = vmatpush.msra.mxu0 %v547
        %691 = vmatpush.msra.mxu0 %v546
        %692 = vmatpush.msra.mxu0 %v545
        %693 = vmatpush.msra.mxu0 %v636
        %694 = vmatpush.msra.mxu0 %v635
        %695 = vmatpush.msra.mxu0 %v634
        %696 = vmatpush.msra.mxu0 %v633
        %697 = vmatmul.f32.gmra.mxu0 %v679
        %v698 = vpop.f32.mrf.mxu0
        %v699 = vadd.f32 %v675, %v698
        %700 = vdwg.mxu0
        %v701 = vmax.f32 %v699, 0.0
        %v702 = vld [vmem:[%s9] sm:$0x3f]
        %v703 = vld [vmem:[%s10] sm:$0x3f]
        %705 = vset.pattern.permute.xlu0 0
        %706 = vperm.xlu0 %705, %v703
        %v707 = vpop.permute.xlu0 %706
        %v710 = vsel %vm591, %v702, 0
        %712 = vmatpush.msra.mxu0 0.0
        %713 = vmatpush.msra.mxu0 0.0
        %714 = vmatpush.msra.mxu0 0.0
        %715 = vmatpush.msra.mxu0 0.0
        %716 = vmatpush.msra.mxu0 0.0
        %717 = vmatpush.msra.mxu0 0.0
        %718 = vmatpush.msra.mxu0 0.0
        %719 = vmatpush.msra.mxu0 0.0
        %720 = vmatpush.msra.mxu0 0.0
        %721 = vmatpush.msra.mxu0 0.0
        %722 = vmatpush.msra.mxu0 0.0
        %723 = vmatpush.msra.mxu0 0.0
        %724 = vmatpush.msra.mxu0 0.0
        %725 = vmatpush.msra.mxu0 0.0
        %726 = vmatpush.msra.mxu0 0.0
        %727 = vmatpush.msra.mxu0 %v701
        %728 = vmatmul.f32.gmra.mxu0 %v710
        %v729 = vpop.f32.mrf.mxu0
        %v730 = vadd.f32 %v707, %v729
        %731 = vdwg.mxu0
        %732 = vst [vmem:[%s540] sm:$0x3f] %v730
        %p733 = scmp.lt.s32.totalorder %s31, 1
        %s734 = scalar_select %p733, %s31, 1
        %p735 = scmp.lt.s32.totalorder %s32, 0
        %s736 = scalar_select %p735, %s32, 0
        %s737 = sadd.s32 %s736, %s734
        %s738 = smul.addr %s737, 8
        %s739 = scalar_lea.vmem %s11, %s738
        %p740 = scmp.lt.s32.totalorder %s31, 1
        %s741 = scalar_select %p740, %s31, 1
        %p742 = scmp.lt.s32.totalorder %s32, 0
        %s743 = scalar_select %p742, %s32, 0
        %s744 = sadd.s32 %s743, %s741
        %s745 = smul.addr %s744, 8
        %s746 = scalar_lea.vmem %s12, %s745
        // Predicated region
        $region69: #{tpu_custom_call.1} parent=63 // pred_check
          %p747 = pneg %p311
        $region70: #{tpu_custom_call.1} parent=63 // pred_check_branch
          %749 = sbr.rel (%p747) target = $region72
        $region71: #{tpu_custom_call.1} parent=63 // pred_region
          _
        $region72: #{tpu_custom_call.1} parent=63 // pred_fallthru
          _
        // Predicated region
        $region73: #{tpu_custom_call.1} parent=63 // pred_check
          %p750 = pneg %p339
        $region74: #{tpu_custom_call.1} parent=63 // pred_check_branch
          %752 = sbr.rel (%p750) target = $region76
        $region75: #{tpu_custom_call.1} parent=63 // pred_region
          _
        $region76: #{tpu_custom_call.1} parent=63 // pred_fallthru
          _
      $region64: #{tpu_custom_call.1} parent=5 // pred_fallthru
        _
      %p753 = scmp.le.s32.totalorder 2, %s22
      // Predicated region
      $region77: #{tpu_custom_call.1} parent=5 // pred_check
        %p754 = pneg %p753
      $region78: #{tpu_custom_call.1} parent=5 // pred_check_branch
        %756 = sbr.rel (%p754) target = $region80
      $region79: #{tpu_custom_call.1} parent=5 // pred_region
        %s757 = ssub.s32 %s22, 2
        // Predicated region
        $region81: #{tpu_custom_call.1} parent=79 // pred_check
          %p758 = pneg %p317
        $region82: #{tpu_custom_call.1} parent=79 // pred_check_branch
          %760 = sbr.rel (%p758) target = $region84
        $region83: #{tpu_custom_call.1} parent=79 // pred_region
          %p761 = scmp.lt.s32.totalorder %s33, 1
          %s762 = scalar_select %p761, %s33, 1
          %p763 = scmp.lt.s32.totalorder %s34, 0
          %s764 = scalar_select %p763, %s34, 0
          %s765 = sadd.s32 %s764, %s762
          %s766 = smul.addr %s765, 8
          %s767 = scalar_lea.vmem %s11, %s766
        $region84: #{tpu_custom_call.1} parent=79 // pred_fallthru
          _
        // Predicated region
        $region85: #{tpu_custom_call.1} parent=79 // pred_check
          %p768 = pneg %p345
        $region86: #{tpu_custom_call.1} parent=79 // pred_check_branch
          %770 = sbr.rel (%p768) target = $region88
        $region87: #{tpu_custom_call.1} parent=79 // pred_region
          %p771 = scmp.lt.s32.totalorder %s33, 1
          %s772 = scalar_select %p771, %s33, 1
          %p773 = scmp.lt.s32.totalorder %s34, 0
          %s774 = scalar_select %p773, %s34, 0
          %s775 = sadd.s32 %s774, %s772
          %s776 = smul.addr %s775, 8
          %s777 = scalar_lea.vmem %s12, %s776
        $region88: #{tpu_custom_call.1} parent=79 // pred_fallthru
          _
      $region80: #{tpu_custom_call.1} parent=5 // pred_fallthru
        _
    $region6: #{tpu_custom_call.1} parent=1 // loop_footer
      %s26 = sadd.s32 1, %s22
    $region7: #{tpu_custom_call.1} parent=1 // loop_footer_branch
      %21 = sbr.rel target = $region3
    $region8: #{tpu_custom_call.1} parent=1 // loop_exit
      _
    %778 = vsyncpa [#allocation3], 1
    %s779 = scalar_lea.sflag [#allocation3], 1
    %780 = vsyncpa %s779, 1

</llo_original>
